<compile_context>
chip_gen: v7x
topology: tpu7x:2x2x1
jax: 0.10.0
libtpu: 0.0.40
codegen_flags: <defaults>
</compile_context>

<pallas_src>
import functools

import jax
import jax.numpy as jnp
from jax.experimental import pallas as pl
from jax.experimental.pallas import tpu as pltpu


def _round_up(x, m):
    return (x + m - 1) // m * m


def _regular_network_kernel(b2_ref, x_ref, w1_ref, b1_ref, w2_ref, out_ref,
                            *, batch, tile_b):
    i = pl.program_id(0)

    # fc1 on the MXU, contracting on C so the batch lands on the 128-lane axis:
    # (hh, C) . (tile_b, C)^T -> (hh, tile_b).  bf16 operands, f32 accumulation.
    h = jax.lax.dot_general(
        w1_ref[...], x_ref[...],
        dimension_numbers=(((1,), (1,)), ((), ())),
        preferred_element_type=jnp.float32)
    h = jnp.maximum(h + b1_ref[...], 0.0)            # b1 (hh,1) broadcasts over lanes

    # fc2 (N = 1) on VPU + XLU sublane reduce (no wasted MXU pass); b2 from SMEM.
    z = jnp.sum(h * w2_ref[...], axis=0, keepdims=True) + b2_ref[0]   # (1, tile_b)

    # Numerically stable softplus on a lane-dense row.
    sp = jnp.maximum(z, 0.0) + jnp.log1p(jnp.exp(-jnp.abs(z)))

    # Mask columns past the true batch (zero-padded rows AND the unspecified
    # rows of a ragged last tile).  jnp.where is a select, so garbage/NaN in
    # the masked branch never reaches the reduction.
    col = i * tile_b + jax.lax.broadcasted_iota(jnp.int32, (1, tile_b), 1)
    sp = jnp.where(col < batch, sp, 0.0)

    # One partial sum per grid step; the final mean is done in the wrapper so
    # the batch grid axis stays "parallel" (no shared accumulator).
    out_ref[0, 0] = jnp.sum(sp)


def regular_network_forward(features, w1, b1, w2, b2, *, tile_b_cap=32768):
    """features: (B, C).  w1: (hh, C), b1: (hh,), w2: (1, hh), b2: (1,)
    (PyTorch nn.Linear layout).  Returns scalar mean(softplus(fc2(relu(fc1(x)))))."""
    B, C = features.shape
    hh = w1.shape[0]
    assert tile_b_cap % 128 == 0

    # bf16 HBM stream for the big operand; compute/accumulation stay f32.
    x = features if features.dtype == jnp.bfloat16 else features.astype(jnp.bfloat16)

    # Row tiles straight out of the (B, C) layout — no transpose / full-tile pad.
    if B < 128:
        # Tiny batches: pad up to one vreg of rows so the single block exactly
        # covers the array (cheap: < 128 rows of zeros).
        x = jnp.pad(x, ((0, 128 - B), (0, 0)))
        b_rows = 128
    else:
        b_rows = B                                    # ragged last tile -> masked

    # tile_b maps to the lane axis after the in-kernel contraction, so keep it a
    # multiple of 128.  Split into >=2 tiles when possible (v7x: both TCs), and
    # keep tiles large (cap 32768) so per-step overhead stays negligible even on
    # v7x's 3.2 TB/s HBM.
    tile_b = max(128, min(_round_up(pl.cdiv(b_rows, 2), 128), tile_b_cap))
    num_tiles = pl.cdiv(b_rows, tile_b)

    w1b = jnp.asarray(w1, jnp.bfloat16)               # (hh, C), streamed bf16
    b1c = jnp.asarray(b1, jnp.float32).reshape(hh, 1)  # column: broadcasts over lanes
    w2c = jnp.asarray(w2, jnp.float32).reshape(hh, 1)  # (1, hh) -> (hh, 1) column
    b2s = jnp.asarray(b2, jnp.float32).reshape(1)      # scalar-prefetched into SMEM

    kernel = functools.partial(_regular_network_kernel, batch=B, tile_b=tile_b)

    # Deeper prefetch on the feature stream only when there are enough tiles
    # for it to matter (hides DMA jitter / first-tile latency).
    x_spec_kwargs = {}
    if num_tiles >= 4:
        x_spec_kwargs["pipeline_mode"] = pl.Buffered(3)
    x_spec = pl.BlockSpec((tile_b, C), lambda i, b2: (i, 0), **x_spec_kwargs)

    cost = pl.CostEstimate(
        flops=2 * b_rows * C * hh + 2 * b_rows * hh,
        transcendentals=2 * b_rows,
        bytes_accessed=(b_rows * C * 2            # bf16 feature stream (no transpose pass)
                        + hh * C * 2              # bf16 W1
                        + (2 * hh + 1) * 4        # b1, w2, b2 (f32)
                        + num_tiles * 4),         # partial sums out
    )

    partials = pl.pallas_call(
        kernel,
        out_shape=jax.ShapeDtypeStruct((num_tiles, 1), jnp.float32),
        grid_spec=pltpu.PrefetchScalarGridSpec(
            num_scalar_prefetch=1,                     # b2 -> SMEM (no VMEM stream)
            grid=(num_tiles,),
            in_specs=[
                x_spec,                                              # (tile_b, C) row tile
                pl.BlockSpec((hh, C), lambda i, b2: (0, 0)),         # W1 (resident)
                pl.BlockSpec((hh, 1), lambda i, b2: (0, 0)),         # b1 column
                pl.BlockSpec((hh, 1), lambda i, b2: (0, 0)),         # w2 column
            ],
            out_specs=pl.BlockSpec((1, 1), lambda i, b2: (i, 0),
                                   memory_space=pltpu.SMEM),         # per-tile partial
        ),
        compiler_params=pltpu.CompilerParams(
            dimension_semantics=("parallel",)),        # independent tiles (v7x 2 TCs)
        cost_estimate=cost,
    )(b2s, x, w1b, b1c, w2c)

    return jnp.sum(partials) / B


def _reference(features, w1, b1, w2, b2):
    # Matches the kernel's numerics: bf16 operands into fc1, f32 accumulation,
    # f32 VPU fc2, stable softplus.
    xb = features.astype(jnp.bfloat16)
    w1b = w1.astype(jnp.bfloat16)
    h = jnp.maximum(jnp.dot(xb, w1b.T, preferred_element_type=jnp.float32) + b1, 0.0)
    z = jnp.sum(h * w2, axis=-1, keepdims=True) + b2
    return jnp.mean(jnp.logaddexp(0.0, z))


if __name__ == "__main__":
    key = jax.random.PRNGKey(0)
    C, HH = 32, 32   # in_channels, hidden

    k_x, k_w1, k_b1, k_w2, k_b2, k_x2 = jax.random.split(key, 6)

    # PyTorch Linear default init: U(-1/sqrt(fan_in), +1/sqrt(fan_in))
    lim1 = 1.0 / jnp.sqrt(jnp.float32(C))
    w1 = jax.random.uniform(k_w1, (HH, C), jnp.float32, -lim1, lim1)
    b1 = jax.random.uniform(k_b1, (HH,), jnp.float32, -lim1, lim1)
    lim2 = 1.0 / jnp.sqrt(jnp.float32(HH))
    w2 = jax.random.uniform(k_w2, (1, HH), jnp.float32, -lim2, lim2)
    b2 = jax.random.uniform(k_b2, (1,), jnp.float32, -lim2, lim2)

    # Small batch (single padded tile).
    feats_small = jax.random.normal(k_x, (16, C), jnp.float32)
    out = jax.block_until_ready(regular_network_forward(feats_small, w1, b1, w2, b2))
    ref = _reference(feats_small, w1, b1, w2, b2)
    assert jnp.allclose(out, ref, atol=1e-5, rtol=1e-4), (out, ref)

    # Unpadded batch with a ragged last tile (2 tiles of 256 covering 300 rows):
    # exercises the multi-tile "parallel" grid and the out-of-bounds column mask.
    feats_big = jax.random.normal(k_x2, (300, C), jnp.float32)
    out2 = jax.block_until_ready(regular_network_forward(feats_big, w1, b1, w2, b2))
    ref2 = _reference(feats_big, w1, b1, w2, b2)
    assert jnp.allclose(out2, ref2, atol=1e-5, rtol=1e-4), (out2, ref2)

    print("KERNEL_OK")
</pallas_src>

<mosaic_0001>
module attributes {stable_mosaic.version = 11 : i64} {
  func.func @_regular_network_kernel(%arg0: i32, %arg1: memref<1xf32, #tpu.memory_space<smem>>, %arg2: memref<128x32xbf16, #tpu.memory_space<vmem>>, %arg3: memref<32x32xbf16, #tpu.memory_space<vmem>>, %arg4: memref<32x1xf32, #tpu.memory_space<vmem>>, %arg5: memref<32x1xf32, #tpu.memory_space<vmem>>, %arg6: memref<1x1xf32, #tpu.memory_space<smem>>) attributes {dimension_semantics = [#tpu.dimension_semantics<parallel>], iteration_bounds = array<i64: 1>, scalar_prefetch = 1 : i64, scratch_operands = 0 : i64, tpu.core_type = #tpu.core_type<tc>, window_params = [{transform_indices = @transform_0, window_bounds = array<i64: 128, 32>}, {pipeline_mode = #tpu.pipeline_mode<synchronous>, transform_indices = @transform_1, window_bounds = array<i64: 32, 32>}, {pipeline_mode = #tpu.pipeline_mode<synchronous>, transform_indices = @transform_2, window_bounds = array<i64: 32, 1>}, {pipeline_mode = #tpu.pipeline_mode<synchronous>, transform_indices = @transform_3, window_bounds = array<i64: 32, 1>}, {transform_indices = @transform_4, window_bounds = array<i64: 1, 1>}]} {
    %c0 = arith.constant 0 : index
    %c0_0 = arith.constant 0 : index
    %0 = vector.load %arg3[%c0, %c0_0] : memref<32x32xbf16, #tpu.memory_space<vmem>>, vector<32x32xbf16>
    %c0_1 = arith.constant 0 : index
    %c0_2 = arith.constant 0 : index
    %1 = vector.load %arg2[%c0_1, %c0_2] : memref<128x32xbf16, #tpu.memory_space<vmem>>, vector<128x32xbf16>
    %cst = arith.constant dense<0.000000e+00> : vector<32x128xf32>
    %2 = tpu.matmul %0, %1, %cst {dimension_numbers = #tpu.dot_dimension_numbers<[1], [1], [0], [0], [0, 0, 1, 0], [], []>} : vector<32x32xbf16>, vector<128x32xbf16>, vector<32x128xf32> -> vector<32x128xf32>
    %c0_3 = arith.constant 0 : index
    %c0_4 = arith.constant 0 : index
    %3 = vector.load %arg4[%c0_3, %c0_4] : memref<32x1xf32, #tpu.memory_space<vmem>>, vector<32x1xf32>
    %4 = vector.broadcast %3 : vector<32x1xf32> to vector<32x128xf32>
    %5 = arith.addf %2, %4 : vector<32x128xf32>
    %cst_5 = arith.constant 0.000000e+00 : f32
    %6 = vector.broadcast %cst_5 : f32 to vector<32x128xf32>
    %7 = arith.maximumf %5, %6 : vector<32x128xf32>
    %c0_6 = arith.constant 0 : index
    %c0_7 = arith.constant 0 : index
    %8 = vector.load %arg5[%c0_6, %c0_7] : memref<32x1xf32, #tpu.memory_space<vmem>>, vector<32x1xf32>
    %9 = vector.broadcast %8 : vector<32x1xf32> to vector<32x128xf32>
    %10 = arith.mulf %7, %9 : vector<32x128xf32>
    %cst_8 = arith.constant dense<0.000000e+00> : vector<128xf32>
    %11 = vector.multi_reduction <add>, %10, %cst_8 [0] : vector<32x128xf32> to vector<128xf32>
    %12 = vector.shape_cast %11 : vector<128xf32> to vector<1x128xf32>
    %c0_9 = arith.constant 0 : index
    %13 = memref.load %arg1[%c0_9] : memref<1xf32, #tpu.memory_space<smem>>
    %14 = vector.broadcast %13 : f32 to vector<1x128xf32>
    %15 = arith.addf %12, %14 : vector<1x128xf32>
    %cst_10 = arith.constant 0.000000e+00 : f32
    %16 = vector.broadcast %cst_10 : f32 to vector<1x128xf32>
    %17 = arith.maximumf %15, %16 : vector<1x128xf32>
    %18 = math.absf %15 : vector<1x128xf32>
    %cst_11 = arith.constant 0.000000e+00 : f32
    %19 = vector.broadcast %cst_11 : f32 to vector<1x128xf32>
    %20 = arith.subf %19, %18 : vector<1x128xf32>
    %21 = math.exp %20 : vector<1x128xf32>
    %22 = math.log1p %21 : vector<1x128xf32>
    %23 = arith.addf %17, %22 : vector<1x128xf32>
    %c128_i32 = arith.constant 128 : i32
    %24 = arith.muli %arg0, %c128_i32 : i32
    %25 = tpu.iota {dimensions = array<i32: 1>} : vector<1x128xi32>
    %26 = vector.broadcast %24 : i32 to vector<1x128xi32>
    %27 = arith.addi %26, %25 : vector<1x128xi32>
    %c16_i32 = arith.constant 16 : i32
    %28 = vector.broadcast %c16_i32 : i32 to vector<1x128xi32>
    %29 = arith.cmpi slt, %27, %28 : vector<1x128xi32>
    %cst_12 = arith.constant 0.000000e+00 : f32
    %30 = vector.broadcast %cst_12 : f32 to vector<1x128xf32>
    %31 = arith.select %29, %23, %30 : vector<1x128xi1>, vector<1x128xf32>
    %32 = vector.shape_cast %31 : vector<1x128xf32> to vector<1x1x128xf32>
    %cst_13 = arith.constant dense<0.000000e+00> : vector<1xf32>
    %33 = vector.multi_reduction <add>, %32, %cst_13 [1, 2] : vector<1x1x128xf32> to vector<1xf32>
    %34 = vector.shape_cast %33 : vector<1xf32> to vector<1x1x1xf32>
    %35 = vector.extract %34[0, 0, 0] : f32 from vector<1x1x1xf32>
    %c0_14 = arith.constant 0 : index
    %c0_15 = arith.constant 0 : index
    %36 = memref.load %arg6[%c0_14, %c0_15] : memref<1x1xf32, #tpu.memory_space<smem>>
    memref.store %35, %arg6[%c0_14, %c0_15] : memref<1x1xf32, #tpu.memory_space<smem>>
    return
  }
  func.func @transform_0(%arg0: i32, %arg1: memref<1xf32, #tpu.memory_space<smem>>) -> (i32, i32) {
    %c0_i32 = arith.constant 0 : i32
    %c0_i32_0 = arith.constant 0 : i32
    return %arg0, %c0_i32 : i32, i32
  }
  func.func @transform_1(%arg0: i32, %arg1: memref<1xf32, #tpu.memory_space<smem>>) -> (i32, i32) {
    %c0_i32 = arith.constant 0 : i32
    %c0_i32_0 = arith.constant 0 : i32
    %c0_i32_1 = arith.constant 0 : i32
    return %c0_i32, %c0_i32_0 : i32, i32
  }
  func.func @transform_2(%arg0: i32, %arg1: memref<1xf32, #tpu.memory_space<smem>>) -> (i32, i32) {
    %c0_i32 = arith.constant 0 : i32
    %c0_i32_0 = arith.constant 0 : i32
    %c0_i32_1 = arith.constant 0 : i32
    return %c0_i32, %c0_i32_0 : i32, i32
  }
  func.func @transform_3(%arg0: i32, %arg1: memref<1xf32, #tpu.memory_space<smem>>) -> (i32, i32) {
    %c0_i32 = arith.constant 0 : i32
    %c0_i32_0 = arith.constant 0 : i32
    %c0_i32_1 = arith.constant 0 : i32
    return %c0_i32, %c0_i32_0 : i32, i32
  }
  func.func @transform_4(%arg0: i32, %arg1: memref<1xf32, #tpu.memory_space<smem>>) -> (i32, i32) {
    %c0_i32 = arith.constant 0 : i32
    %c0_i32_0 = arith.constant 0 : i32
    return %arg0, %c0_i32 : i32, i32
  }
}

</mosaic_0001>

<llo_original>
// kernel: tpu_custom_call.1
$region0: #{tpu_custom_call.1}
  #allocation0 [shape = 'u32[]', space=smem, size = 0x4, offset = 0x4, fixed_abs, tag = 'smem constant byte address 0x4 - core index']
  #allocation1 [shape = 'u32[144,128]{1,0:T(1,128)}', space=vmem, size = 0x12000, scoped, tag = 'internal scratch']
  #allocation2 [shape = 's32[1]{0}', space=sflag, size = 0x4, scoped, tag = 'scoped memory for tpu_custom_call.1']
  #allocation3 [shape = 'f32[1]{0:T(128)S(6)}', space=smem, size = 0x200, scoped, tag = 'prefetched SMEM operand 0']
  %s0 = inlined_call_operand.<no memory space> [shape: f32[1], index: 0, kind: input, shape index: {}]
  %s1 = inlined_call_operand.vmem [shape: bf16[128,32], index: 1, kind: input, shape index: {}]
  %s2 = inlined_call_operand.vmem [shape: bf16[32,32], index: 2, kind: input, shape index: {}]
  %s3 = inlined_call_operand.vmem [shape: f32[32,1], index: 3, kind: input, shape index: {}]
  %s4 = inlined_call_operand.vmem [shape: f32[32,1], index: 4, kind: input, shape index: {}]
  %s5 = inlined_call_operand.hbm [shape: f32[1,1], index: 5, kind: output, shape index: {}]
  %s6 = sld [smem:[#allocation0]]
  $region26: #{tpu_custom_call.1} parent=0
    _
  %s8 = ssub.s32 1, %s6
  %s9 = scalar_select 0, %s8, %s6
  %10 = sst [smem:[#allocation3]] %s0
  $region1: #{tpu_custom_call.1} parent=0
    #allocation4 [shape = 'u8[512]{0}', space=smem, size = 0x200, scoped, tag = 'output window, operand 0, single buffered']
    #allocation5 [shape = 's32[1]{0}', space=sflag, size = 0x4, scoped, tag = 'scoped memory for tpu_custom_call.1']
    %11 = vsyncpa [#allocation5], 0
    // Predicated region
    $region2: #{tpu_custom_call.1} parent=1 // pred_check
      _
    $region3: #{tpu_custom_call.1} parent=1 // pred_check_branch
      %13 = sbr.rel (0) target = $region5
    $region4: #{tpu_custom_call.1} parent=1 // pred_region
      _
    $region5: #{tpu_custom_call.1} parent=1 // pred_fallthru
      _
    // Predicated region
    $region6: #{tpu_custom_call.1} parent=1 // pred_check
      _
    $region7: #{tpu_custom_call.1} parent=1 // pred_check_branch
      %15 = sbr.rel (0) target = $region9
    $region8: #{tpu_custom_call.1} parent=1 // pred_region
      _
    $region9: #{tpu_custom_call.1} parent=1 // pred_fallthru
      _
    // Predicated region
    $region10: #{tpu_custom_call.1} parent=1 // pred_check
      _
    $region11: #{tpu_custom_call.1} parent=1 // pred_check_branch
      %17 = sbr.rel (0) target = $region13
    $region12: #{tpu_custom_call.1} parent=1 // pred_region
      _
    $region13: #{tpu_custom_call.1} parent=1 // pred_fallthru
      _
    // Predicated region
    $region14: #{tpu_custom_call.1} parent=1 // pred_check
      _
    $region15: #{tpu_custom_call.1} parent=1 // pred_check_branch
      %19 = sbr.rel (0) target = $region17
    $region16: #{tpu_custom_call.1} parent=1 // pred_region
      _
    $region17: #{tpu_custom_call.1} parent=1 // pred_fallthru
      _
    %v21 = vld [vmem:[%s2] sm:$0xf]
    %v22 = vld [vmem:[%s2 + $0x4] sm:$0xf]
    %v23 = vld [vmem:[%s2 + $0x8] sm:$0xf]
    %v24 = vld [vmem:[%s2 + $0xc] sm:$0xf]
    %v25 = vld [vmem:[%s1] sm:$0xf]
    %v26 = vld [vmem:[%s1 + $0x4] sm:$0xf]
    %v27 = vld [vmem:[%s1 + $0x8] sm:$0xf]
    %v28 = vld [vmem:[%s1 + $0xc] sm:$0xf]
    %v29 = vld [vmem:[%s1 + $0x10] sm:$0xf]
    %v30 = vld [vmem:[%s1 + $0x14] sm:$0xf]
    %v31 = vld [vmem:[%s1 + $0x18] sm:$0xf]
    %v32 = vld [vmem:[%s1 + $0x1c] sm:$0xf]
    %v33 = vld [vmem:[%s1 + $0x20] sm:$0xf]
    %v34 = vld [vmem:[%s1 + $0x24] sm:$0xf]
    %v35 = vld [vmem:[%s1 + $0x28] sm:$0xf]
    %v36 = vld [vmem:[%s1 + $0x2c] sm:$0xf]
    %v37 = vld [vmem:[%s1 + $0x30] sm:$0xf]
    %v38 = vld [vmem:[%s1 + $0x34] sm:$0xf]
    %v39 = vld [vmem:[%s1 + $0x38] sm:$0xf]
    %v40 = vld [vmem:[%s1 + $0x3c] sm:$0xf]
    %v41 = vld [vmem:[%s3] sm:$0xff]
    %v42 = vld [vmem:[%s3 + $0x8] sm:$0xff]
    %v43 = vld [vmem:[%s3 + $0x10] sm:$0xff]
    %v44 = vld [vmem:[%s3 + $0x18] sm:$0xff]
    %46 = vset.pattern.permute.xlu0 0
    %47 = vperm.xlu0 %46, %v41
    %v48 = vpop.permute.xlu0 %47
    %51 = vset.pattern.permute.xlu0 0
    %52 = vperm.xlu0 %51, %v42
    %v53 = vpop.permute.xlu0 %52
    %56 = vset.pattern.permute.xlu0 0
    %57 = vperm.xlu0 %56, %v43
    %v58 = vpop.permute.xlu0 %57
    %61 = vset.pattern.permute.xlu0 0
    %62 = vperm.xlu0 %61, %v44
    %v63 = vpop.permute.xlu0 %62
    %v69 = vunpack.c.l.b16 %v21
    %v70 = vunpack.c.l.b16 %v22
    %v71 = vunpack.c.l.b16 %v23
    %v72 = vunpack.c.l.b16 %v24
    %v73 = vpack.c.b16 %v70, %v69
    %v74 = vpack.c.b16 %v72, %v71
    %v91 = vunpack.c.l.b16 %v25
    %v92 = vunpack.c.l.b16 %v26
    %v93 = vunpack.c.l.b16 %v27
    %v94 = vunpack.c.l.b16 %v28
    %v95 = vunpack.c.l.b16 %v29
    %v96 = vunpack.c.l.b16 %v30
    %v97 = vunpack.c.l.b16 %v31
    %v98 = vunpack.c.l.b16 %v32
    %v99 = vunpack.c.l.b16 %v33
    %v100 = vunpack.c.l.b16 %v34
    %v101 = vunpack.c.l.b16 %v35
    %v102 = vunpack.c.l.b16 %v36
    %v103 = vunpack.c.l.b16 %v37
    %v104 = vunpack.c.l.b16 %v38
    %v105 = vunpack.c.l.b16 %v39
    %v106 = vunpack.c.l.b16 %v40
    %v107 = vpack.c.b16 %v92, %v91
    %v108 = vpack.c.b16 %v94, %v93
    %v109 = vpack.c.b16 %v96, %v95
    %v110 = vpack.c.b16 %v98, %v97
    %v111 = vpack.c.b16 %v100, %v99
    %v112 = vpack.c.b16 %v102, %v101
    %v113 = vpack.c.b16 %v104, %v103
    %v114 = vpack.c.b16 %v106, %v105
    %vm115 = vcmask 261120
    %v117 = vsel %vm115, %v73, 0
    %v120 = vsel %vm115, %v74, 0
    %v123 = vsel %vm115, %v107, 0
    %v126 = vsel %vm115, %v108, 0
    %v129 = vsel %vm115, %v109, 0
    %v132 = vsel %vm115, %v110, 0
    %v135 = vsel %vm115, %v111, 0
    %v138 = vsel %vm115, %v112, 0
    %v141 = vsel %vm115, %v113, 0
    %v144 = vsel %vm115, %v114, 0
    %146 = vmatprep.subr.bf16.mxu0 0
    %147 = vmatpush1.bf16.xpose.msra.mxu0 %v123
    %148 = vmatprep.subr.bf16.mxu0 0
    %149 = vmatpush1.bf16.xpose.msra.mxu0 %v126
    %150 = vmatprep.subr.bf16.mxu0 0
    %151 = vmatpush1.bf16.xpose.msra.mxu0 %v129
    %152 = vmatprep.subr.bf16.mxu0 0
    %153 = vmatpush1.bf16.xpose.msra.mxu0 %v132
    %154 = vmatprep.subr.bf16.mxu0 0
    %155 = vmatpush1.bf16.xpose.msra.mxu0 %v135
    %156 = vmatprep.subr.bf16.mxu0 0
    %157 = vmatpush1.bf16.xpose.msra.mxu0 %v138
    %158 = vmatprep.subr.bf16.mxu0 0
    %159 = vmatpush1.bf16.xpose.msra.mxu0 %v141
    %160 = vmatprep.subr.bf16.mxu0 0
    %161 = vmatpush1.bf16.xpose.msra.mxu0 %v144
    %162 = vmatprep.subr.bf16.mxu0 0
    %163 = vmatpush1.bf16.xpose.msra.mxu0 0
    %164 = vmatprep.subr.bf16.mxu0 0
    %165 = vmatpush1.bf16.xpose.msra.mxu0 0
    %166 = vmatprep.subr.bf16.mxu0 0
    %167 = vmatpush1.bf16.xpose.msra.mxu0 0
    %168 = vmatprep.subr.bf16.mxu0 0
    %169 = vmatpush1.bf16.xpose.msra.mxu0 0
    %170 = vmatprep.subr.bf16.mxu0 0
    %171 = vmatpush1.bf16.xpose.msra.mxu0 0
    %172 = vmatprep.subr.bf16.mxu0 0
    %173 = vmatpush1.bf16.xpose.msra.mxu0 0
    %174 = vmatprep.subr.bf16.mxu0 0
    %175 = vmatpush1.bf16.xpose.msra.mxu0 0
    %176 = vmatprep.subr.bf16.mxu0 0
    %177 = vmatpush1.bf16.xpose.msra.mxu0 0
    %178 = vmatprep.mubr.bf16.mxu0 0
    %179 = vmatmul.mubr.bf16.gmra.mrb[0].mxu0 %v117
    %v180 = vpop.f32.mrb[0].mxu0
    %v181 = vadd.f32 %v48, %v180
    %v182 = vpop.f32.mrb[0].mxu0
    %v183 = vpop.f32.mrb[0].mxu0
    %v184 = vadd.f32 %v53, %v183
    %v185 = vpop.f32.mrb[0].mxu0
    %186 = vmatprep.mubr.bf16.mxu0 0
    %187 = vmatmul.mubr.bf16.gmra.mrb[0].mxu0 %v120
    %v188 = vpop.f32.mrb[0].mxu0
    %v189 = vadd.f32 %v58, %v188
    %v190 = vpop.f32.mrb[0].mxu0
    %v191 = vpop.f32.mrb[0].mxu0
    %v192 = vadd.f32 %v63, %v191
    %v193 = vpop.f32.mrb[0].mxu0
    %194 = vdwg.mxu0
    %v195 = vmax.f32 %v181, 0.0
    %v196 = vmax.f32 %v184, 0.0
    %v197 = vmax.f32 %v189, 0.0
    %v198 = vmax.f32 %v192, 0.0
    %v199 = vld [vmem:[%s4] sm:$0xff]
    %v200 = vld [vmem:[%s4 + $0x8] sm:$0xff]
    %v201 = vld [vmem:[%s4 + $0x10] sm:$0xff]
    %v202 = vld [vmem:[%s4 + $0x18] sm:$0xff]
    %204 = vset.pattern.permute.xlu0 0
    %205 = vperm.xlu0 %204, %v199
    %v206 = vpop.permute.xlu0 %205
    %209 = vset.pattern.permute.xlu0 0
    %210 = vperm.xlu0 %209, %v200
    %v211 = vpop.permute.xlu0 %210
    %214 = vset.pattern.permute.xlu0 0
    %215 = vperm.xlu0 %214, %v201
    %v216 = vpop.permute.xlu0 %215
    %219 = vset.pattern.permute.xlu0 0
    %220 = vperm.xlu0 %219, %v202
    %v221 = vpop.permute.xlu0 %220
    %v223 = vmul.f32 %v195, %v206
    %v224 = vmul.f32 %v196, %v211
    %v225 = vmul.f32 %v197, %v216
    %v226 = vmul.f32 %v198, %v221
    %v227 = vadd.f32 %v223, %v224
    %v228 = vadd.f32 %v227, %v225
    %v229 = vadd.f32 %v228, %v226
    %v230 = vrot.slane %v229, 4
    %v231 = vadd.f32 %v229, %v230
    %v232 = vrot.slane %v231, 2
    %v233 = vadd.f32 %v231, %v232
    %v234 = vrot.slane %v233, 1
    %v235 = vadd.f32 %v233, %v234
    %s236 = sld [smem:[#allocation3]]
    %v237 = vstv %s236
    %v238 = vadd.f32 %v235, %v237
    %v239 = vmax.f32 %v238, 0.0
    %v240 = vand.u32 2147483647, %v238
    %v241 = vsub.f32 0.0, %v240
    %v242 = vmul.f32 %v241, 1.442695
    %v243 = vpow.pop %v242
    %v244 = vadd.f32 %v243, 1.0
    %v245 = vlog2.pop %v244
    %v246 = vmul.f32 %v245, 0.6931472
    %v247 = vmul.f32 -0.5, %v243
    %v248 = vadd.f32 %v247, 1.0
    %v249 = vmul.f32 %v248, %v243
    %v250 = vand.u32 2147483647, %v243
    %vm251 = vcmp.lt.f32.partialorder %v250, 0.0004427343
    %v252 = vsel %vm251, %v249, %v246
    %v253 = vadd.f32 %v239, %v252
    %s254 = smul.u32 0, 128
    %v255 = vlaneseq
    %v256 = vand.u32 %v255, 127
    %v257 = vstv %s254
    %v258 = vadd.s32 %v257, %v256
    %vm259 = vcmp.lt.s32.totalorder %v258, 16
    %v260 = vsel %vm259, %v253, 0.0
    %vm261 = vcmask 1040384
    %v262 = vsel %vm261, %v260, 0.0
    %263 = vadd.xlane.f32.xlu0 %v262
    %v264 = vpop.xlane.xlu0 %263
    %v265 = vrot.slane %v264, 4
    %v266 = vadd.f32 %v264, %v265
    %v267 = vrot.slane %v266, 2
    %v268 = vadd.f32 %v266, %v267
    %v269 = vrot.slane %v268, 1
    %v270 = vadd.f32 %v268, %v269
    %s271 = vtos %v270
    %s272 = scalar_lea.smem [#allocation4], 0
    %273 = sst [smem:[%s272]] %s271
    // Predicated region
    $region18: #{tpu_custom_call.1} parent=1 // pred_check
      _
    $region19: #{tpu_custom_call.1} parent=1 // pred_check_branch
      %275 = sbr.rel (0) target = $region21
    $region20: #{tpu_custom_call.1} parent=1 // pred_region
      %s277 = ssub.s32 16, 16
      %278 = vsyncadd [#allocation5], %s277
      %281 = dma.smem_to_hbm [#allocation4], 16, %s5, [#allocation5]
    $region21: #{tpu_custom_call.1} parent=1 // pred_fallthru
      _
    // Predicated region
    $region22: #{tpu_custom_call.1} parent=1 // pred_check
      _
    $region23: #{tpu_custom_call.1} parent=1 // pred_check_branch
      %283 = sbr.rel (0) target = $region25
    $region24: #{tpu_custom_call.1} parent=1 // pred_region
      %284 = dma.done [#allocation5], 16
    $region25: #{tpu_custom_call.1} parent=1 // pred_fallthru
      _
    %285 = sfence
    %286 = vsyncpa [#allocation5], 1

</llo_original>
